<compile_context>
chip_gen: v5e
topology: v5e:2x2
jax: 0.10.0
libtpu: 0.0.40
codegen_flags: <defaults>
</compile_context>

<pallas_src>
import jax
import jax.numpy as jnp
from jax import lax
from jax.experimental import pallas as pl
from jax.experimental.pallas import tpu as pltpu


def _round_up(x, m):
    return ((x + m - 1) // m) * m


def mlp_critic_kernel(obs_ref, w1_ref, b1_ref, w2_ref, b2_ref, w3_ref, b3_ref,
                      out_ref):
    # obs_ref: [tile_b, obs_dim] (native layout, batch tile on sublanes).
    x = obs_ref[...]

    # fc1 + tanh: contract obs_dim of both operands (A @ B^T form); the result
    # [hid, tile_b] puts the batch on the lane axis for everything downstream.
    h1 = jnp.tanh(
        lax.dot_general(w1_ref[...], x, (((1,), (1,)), ((), ())),
                        preferred_element_type=jnp.float32)
        + b1_ref[...])                                     # [hid, tile_b]

    # fc2 + tanh.
    h2 = jnp.tanh(
        jnp.dot(w2_ref[...], h1, preferred_element_type=jnp.float32)
        + b2_ref[...])                                     # [hid, tile_b]

    # fc3 (output width 1): VPU multiply + sublane (XLU) reduction instead of a
    # wasteful N=1 MXU matmul; result is a lane-dense [1, tile_b] row.
    v = jnp.sum(h2 * w3_ref[...], axis=0, keepdims=True) + b3_ref[0]
    out_ref[...] = v.astype(out_ref.dtype)


def _choose_batch_tile(B):
    """Batch-tile size: one step while overhead-bound, two balanced 128-aligned
    tiles for mid sizes (v7x 2-TC sharding), capped at 2048 beyond that."""
    if B <= 1024:
        return B                        # single full-array block, no masking
    B128 = _round_up(B, 128)
    if B128 <= 4096:
        return _round_up(pl.cdiv(B128, 2), 128)   # exactly two tiles
    return 2048


@jax.jit
def mlp_critic_forward(obs, params):
    """obs: [B, obs_dim] f32 -> value: [B] f32 (== torch.squeeze(v, -1))."""
    w1, b1, w2, b2, w3, b3 = params      # PyTorch layout: w [out, in], b [out]
    B, obs_dim = obs.shape
    hid = w1.shape[0]

    tile_b = _choose_batch_tile(B)
    num_tiles = pl.cdiv(B, tile_b)       # last block (if partial) is masked

    b1c = b1.reshape(hid, 1)
    b2c = b2.reshape(hid, 1)
    w3c = w3.reshape(hid, 1)             # fc3 weight as a column
    b3s = b3.reshape(1)                  # scalar bias -> SMEM

    const = lambda i: (0, 0)             # weights stay VMEM-resident

    out = pl.pallas_call(
        mlp_critic_kernel,
        out_shape=jax.ShapeDtypeStruct((1, B), jnp.float32),
        grid=(num_tiles,),
        in_specs=[
            pl.BlockSpec((tile_b, obs_dim), lambda i: (i, 0)),    # obs streams
            pl.BlockSpec((hid, obs_dim), const),                  # w1
            pl.BlockSpec((hid, 1), const),                        # b1
            pl.BlockSpec((hid, hid), const),                      # w2
            pl.BlockSpec((hid, 1), const),                        # b2
            pl.BlockSpec((hid, 1), const),                        # w3
            pl.BlockSpec(memory_space=pltpu.MemorySpace.SMEM),    # b3 scalar
        ],
        out_specs=pl.BlockSpec((1, tile_b), lambda i: (0, i)),    # lane-dense
        compiler_params=pltpu.CompilerParams(
            dimension_semantics=("parallel",)),
    )(obs, w1, b1c, w2, b2c, w3c, b3s)

    return out[0]                         # [B], matches torch.squeeze(v, -1)


def init_params(key, obs_dim, hid_dim):
    """Deterministic synthetic init in PyTorch nn.Linear layout (w: [out, in])."""
    ks = jax.random.split(key, 6)

    def lin(kw, kb, fan_in, fan_out):
        bound = 1.0 / jnp.sqrt(fan_in)
        w = jax.random.uniform(kw, (fan_out, fan_in), jnp.float32, -bound, bound)
        b = jax.random.uniform(kb, (fan_out,), jnp.float32, -bound, bound)
        return w, b

    w1, b1 = lin(ks[0], ks[1], obs_dim, hid_dim)
    w2, b2 = lin(ks[2], ks[3], hid_dim, hid_dim)
    w3, b3 = lin(ks[4], ks[5], hid_dim, 1)
    return (w1, b1, w2, b2, w3, b3)


def mlp_critic_reference(obs, params):
    w1, b1, w2, b2, w3, b3 = params
    x = jnp.tanh(obs @ w1.T + b1)
    x = jnp.tanh(x @ w2.T + b2)
    v = x @ w3.T + b3
    return jnp.squeeze(v, -1)


if __name__ == "__main__":
    key = jax.random.PRNGKey(0)
    k_obs, k_par, k_big = jax.random.split(key, 3)

    obs_dim, hid_dim = 16, 32
    params = init_params(k_par, obs_dim, hid_dim)

    # Tolerance note: default-precision f32 matmuls on TPU run reduced-precision
    # MXU passes in both the kernel and the XLA reference; fc3 differs
    # structurally (VPU f32 reduction vs MXU), so allow ~1e-3.
    ATOL = RTOL = 2e-3

    # Small RL-style batch: single full-array block (no padding, no masking).
    B = 8
    obs = jax.random.normal(k_obs, (B, obs_dim), dtype=jnp.float32)
    out = jax.block_until_ready(mlp_critic_forward(obs, params))
    ref = mlp_critic_reference(obs, params)
    assert out.shape == (B,), out.shape
    assert jnp.allclose(out, ref, atol=ATOL, rtol=RTOL), (out, ref)

    # Larger ragged batch: two 128-aligned tiles, masked tail, no HBM pad copy.
    B2 = 1300
    obs2 = jax.random.normal(k_big, (B2, obs_dim), dtype=jnp.float32)
    out2 = jax.block_until_ready(mlp_critic_forward(obs2, params))
    ref2 = mlp_critic_reference(obs2, params)
    assert out2.shape == (B2,), out2.shape
    assert jnp.allclose(out2, ref2, atol=ATOL, rtol=RTOL)

    print("KERNEL_OK")
</pallas_src>

<mosaic_0001>
module attributes {stable_mosaic.version = 11 : i64} {
  func.func @mlp_critic_kernel(%arg0: i32, %arg1: memref<8x16xf32, #tpu.memory_space<vmem>>, %arg2: memref<32x16xf32, #tpu.memory_space<vmem>>, %arg3: memref<32x1xf32, #tpu.memory_space<vmem>>, %arg4: memref<32x32xf32, #tpu.memory_space<vmem>>, %arg5: memref<32x1xf32, #tpu.memory_space<vmem>>, %arg6: memref<32x1xf32, #tpu.memory_space<vmem>>, %arg7: memref<1xf32, #tpu.memory_space<smem>>, %arg8: memref<1x8xf32, #tpu.memory_space<vmem>>) attributes {dimension_semantics = [#tpu.dimension_semantics<parallel>], iteration_bounds = array<i64: 1>, scalar_prefetch = 0 : i64, scratch_operands = 0 : i64, tpu.core_type = #tpu.core_type<tc>, window_params = [{transform_indices = @transform_0, window_bounds = array<i64: 8, 16>}, {pipeline_mode = #tpu.pipeline_mode<synchronous>, transform_indices = @transform_1, window_bounds = array<i64: 32, 16>}, {pipeline_mode = #tpu.pipeline_mode<synchronous>, transform_indices = @transform_2, window_bounds = array<i64: 32, 1>}, {pipeline_mode = #tpu.pipeline_mode<synchronous>, transform_indices = @transform_3, window_bounds = array<i64: 32, 32>}, {pipeline_mode = #tpu.pipeline_mode<synchronous>, transform_indices = @transform_4, window_bounds = array<i64: 32, 1>}, {pipeline_mode = #tpu.pipeline_mode<synchronous>, transform_indices = @transform_5, window_bounds = array<i64: 32, 1>}, {transform_indices = @transform_6, window_bounds = array<i64: 1>}, {transform_indices = @transform_7, window_bounds = array<i64: 1, 8>}]} {
    %c0 = arith.constant 0 : index
    %c0_0 = arith.constant 0 : index
    %0 = vector.load %arg1[%c0, %c0_0] : memref<8x16xf32, #tpu.memory_space<vmem>>, vector<8x16xf32>
    %c0_1 = arith.constant 0 : index
    %c0_2 = arith.constant 0 : index
    %1 = vector.load %arg2[%c0_1, %c0_2] : memref<32x16xf32, #tpu.memory_space<vmem>>, vector<32x16xf32>
    %cst = arith.constant dense<0.000000e+00> : vector<32x8xf32>
    %2 = tpu.matmul %1, %0, %cst {dimension_numbers = #tpu.dot_dimension_numbers<[1], [1], [0], [0], [0, 0, 1, 0], [], []>} : vector<32x16xf32>, vector<8x16xf32>, vector<32x8xf32> -> vector<32x8xf32>
    %c0_3 = arith.constant 0 : index
    %c0_4 = arith.constant 0 : index
    %3 = vector.load %arg3[%c0_3, %c0_4] : memref<32x1xf32, #tpu.memory_space<vmem>>, vector<32x1xf32>
    %4 = vector.broadcast %3 : vector<32x1xf32> to vector<32x8xf32>
    %5 = arith.addf %2, %4 : vector<32x8xf32>
    %6 = math.tanh %5 : vector<32x8xf32>
    %c0_5 = arith.constant 0 : index
    %c0_6 = arith.constant 0 : index
    %7 = vector.load %arg4[%c0_5, %c0_6] : memref<32x32xf32, #tpu.memory_space<vmem>>, vector<32x32xf32>
    %cst_7 = arith.constant dense<0.000000e+00> : vector<32x8xf32>
    %8 = tpu.matmul %7, %6, %cst_7 {dimension_numbers = #tpu.dot_dimension_numbers<[1], [0], [0], [1], [0, 0, 1, 1], [], []>} : vector<32x32xf32>, vector<32x8xf32>, vector<32x8xf32> -> vector<32x8xf32>
    %c0_8 = arith.constant 0 : index
    %c0_9 = arith.constant 0 : index
    %9 = vector.load %arg5[%c0_8, %c0_9] : memref<32x1xf32, #tpu.memory_space<vmem>>, vector<32x1xf32>
    %10 = vector.broadcast %9 : vector<32x1xf32> to vector<32x8xf32>
    %11 = arith.addf %8, %10 : vector<32x8xf32>
    %12 = math.tanh %11 : vector<32x8xf32>
    %c0_10 = arith.constant 0 : index
    %c0_11 = arith.constant 0 : index
    %13 = vector.load %arg6[%c0_10, %c0_11] : memref<32x1xf32, #tpu.memory_space<vmem>>, vector<32x1xf32>
    %14 = vector.broadcast %13 : vector<32x1xf32> to vector<32x8xf32>
    %15 = arith.mulf %12, %14 : vector<32x8xf32>
    %cst_12 = arith.constant dense<0.000000e+00> : vector<8xf32>
    %16 = vector.multi_reduction <add>, %15, %cst_12 [0] : vector<32x8xf32> to vector<8xf32>
    %17 = vector.shape_cast %16 : vector<8xf32> to vector<1x8xf32>
    %c0_13 = arith.constant 0 : index
    %18 = memref.load %arg7[%c0_13] : memref<1xf32, #tpu.memory_space<smem>>
    %19 = vector.broadcast %18 : f32 to vector<1x8xf32>
    %20 = arith.addf %17, %19 : vector<1x8xf32>
    %c0_14 = arith.constant 0 : index
    %c0_15 = arith.constant 0 : index
    %21 = vector.load %arg8[%c0_14, %c0_15] : memref<1x8xf32, #tpu.memory_space<vmem>>, vector<1x8xf32>
    tpu.vector_store %arg8[%c0_14, %c0_15], %20 {strides = array<i32>} : memref<1x8xf32, #tpu.memory_space<vmem>>, vector<1x8xf32>,
    return
  }
  func.func @transform_0(%arg0: i32) -> (i32, i32) {
    %c0_i32 = arith.constant 0 : i32
    %c0_i32_0 = arith.constant 0 : i32
    return %arg0, %c0_i32 : i32, i32
  }
  func.func @transform_1(%arg0: i32) -> (i32, i32) {
    %c0_i32 = arith.constant 0 : i32
    %c0_i32_0 = arith.constant 0 : i32
    %c0_i32_1 = arith.constant 0 : i32
    return %c0_i32, %c0_i32_0 : i32, i32
  }
  func.func @transform_2(%arg0: i32) -> (i32, i32) {
    %c0_i32 = arith.constant 0 : i32
    %c0_i32_0 = arith.constant 0 : i32
    %c0_i32_1 = arith.constant 0 : i32
    return %c0_i32, %c0_i32_0 : i32, i32
  }
  func.func @transform_3(%arg0: i32) -> (i32, i32) {
    %c0_i32 = arith.constant 0 : i32
    %c0_i32_0 = arith.constant 0 : i32
    %c0_i32_1 = arith.constant 0 : i32
    return %c0_i32, %c0_i32_0 : i32, i32
  }
  func.func @transform_4(%arg0: i32) -> (i32, i32) {
    %c0_i32 = arith.constant 0 : i32
    %c0_i32_0 = arith.constant 0 : i32
    %c0_i32_1 = arith.constant 0 : i32
    return %c0_i32, %c0_i32_0 : i32, i32
  }
  func.func @transform_5(%arg0: i32) -> (i32, i32) {
    %c0_i32 = arith.constant 0 : i32
    %c0_i32_0 = arith.constant 0 : i32
    %c0_i32_1 = arith.constant 0 : i32
    return %c0_i32, %c0_i32_0 : i32, i32
  }
  func.func @transform_6(%arg0: i32) -> i32 {
    %c0_i32 = arith.constant 0 : i32
    %c0_i32_0 = arith.constant 0 : i32
    return %c0_i32 : i32
  }
  func.func @transform_7(%arg0: i32) -> (i32, i32) {
    %c0_i32 = arith.constant 0 : i32
    %c0_i32_0 = arith.constant 0 : i32
    return %c0_i32, %arg0 : i32, i32
  }
}

</mosaic_0001>

<llo_original>
// kernel: mlp_critic_forward.1
$region0: #{mlp_critic_forward.1}
  #allocation0 [shape = 'u32[]', space=smem, size = 0x4, offset = 0x4, fixed_abs, tag = 'smem constant byte address 0x4 - core index']
  #allocation1 [shape = 'u32[72,128]{1,0:T(1,128)}', space=vmem, size = 0x9000, scoped, tag = 'internal scratch']
  #allocation2 [shape = 'f32[1]{0:T(128)S(6)}', space=smem, size = 0x200, scoped, tag = 'scoped memory for mlp_critic_forward.1']
  %s0 = inlined_call_operand.vmem [shape: f32[8,16], index: 0, kind: input, shape index: {}]
  %s1 = inlined_call_operand.vmem [shape: f32[32,16], index: 1, kind: input, shape index: {}]
  %s2 = inlined_call_operand.vmem [shape: f32[32,1], index: 2, kind: input, shape index: {}]
  %s3 = inlined_call_operand.vmem [shape: f32[32,32], index: 3, kind: input, shape index: {}]
  %s4 = inlined_call_operand.vmem [shape: f32[32,1], index: 4, kind: input, shape index: {}]
  %s5 = inlined_call_operand.vmem [shape: f32[32,1], index: 5, kind: input, shape index: {}]
  %s6 = inlined_call_operand.<no memory space> [shape: f32[1], index: 6, kind: input, shape index: {}]
  %s7 = inlined_call_operand.hbm [shape: f32[1,8], index: 7, kind: output, shape index: {}]
  %s8 = sld [smem:[#allocation0]]
  $region38: #{mlp_critic_forward.1} parent=0
    _
  %s10 = ssub.s32 1, %s8
  %s11 = scalar_select 0, %s10, %s8
  %12 = sst [smem:[#allocation2]] %s6
  $region1: #{mlp_critic_forward.1} parent=0
    #allocation3 [shape = 'u8[512]{0}', space=vmem, size = 0x400, scoped, tag = 'output window, operand 0, single buffered']
    #allocation4 [shape = 's32[1]{0}', space=sflag, size = 0x4, scoped, tag = 'scoped memory for mlp_critic_forward.1']
    %13 = vsyncpa [#allocation4], 0
    // Predicated region
    $region2: #{mlp_critic_forward.1} parent=1 // pred_check
      _
    $region3: #{mlp_critic_forward.1} parent=1 // pred_check_branch
      %15 = sbr.rel (0) target = $region5
    $region4: #{mlp_critic_forward.1} parent=1 // pred_region
      _
    $region5: #{mlp_critic_forward.1} parent=1 // pred_fallthru
      _
    // Predicated region
    $region6: #{mlp_critic_forward.1} parent=1 // pred_check
      _
    $region7: #{mlp_critic_forward.1} parent=1 // pred_check_branch
      %17 = sbr.rel (0) target = $region9
    $region8: #{mlp_critic_forward.1} parent=1 // pred_region
      _
    $region9: #{mlp_critic_forward.1} parent=1 // pred_fallthru
      _
    // Predicated region
    $region10: #{mlp_critic_forward.1} parent=1 // pred_check
      _
    $region11: #{mlp_critic_forward.1} parent=1 // pred_check_branch
      %19 = sbr.rel (0) target = $region13
    $region12: #{mlp_critic_forward.1} parent=1 // pred_region
      _
    $region13: #{mlp_critic_forward.1} parent=1 // pred_fallthru
      _
    // Predicated region
    $region14: #{mlp_critic_forward.1} parent=1 // pred_check
      _
    $region15: #{mlp_critic_forward.1} parent=1 // pred_check_branch
      %21 = sbr.rel (0) target = $region17
    $region16: #{mlp_critic_forward.1} parent=1 // pred_region
      _
    $region17: #{mlp_critic_forward.1} parent=1 // pred_fallthru
      _
    // Predicated region
    $region18: #{mlp_critic_forward.1} parent=1 // pred_check
      _
    $region19: #{mlp_critic_forward.1} parent=1 // pred_check_branch
      %23 = sbr.rel (0) target = $region21
    $region20: #{mlp_critic_forward.1} parent=1 // pred_region
      _
    $region21: #{mlp_critic_forward.1} parent=1 // pred_fallthru
      _
    // Predicated region
    $region22: #{mlp_critic_forward.1} parent=1 // pred_check
      _
    $region23: #{mlp_critic_forward.1} parent=1 // pred_check_branch
      %25 = sbr.rel (0) target = $region25
    $region24: #{mlp_critic_forward.1} parent=1 // pred_region
      _
    $region25: #{mlp_critic_forward.1} parent=1 // pred_fallthru
      _
    // Predicated region
    $region26: #{mlp_critic_forward.1} parent=1 // pred_check
      _
    $region27: #{mlp_critic_forward.1} parent=1 // pred_check_branch
      %27 = sbr.rel (0) target = $region29
    $region28: #{mlp_critic_forward.1} parent=1 // pred_region
      _
    $region29: #{mlp_critic_forward.1} parent=1 // pred_fallthru
      _
    %v28 = vld [vmem:[%s0] sm:$0xff]
    %v29 = vld [vmem:[%s1] sm:$0xff]
    %v30 = vld [vmem:[%s1 + $0x8] sm:$0xff]
    %v31 = vld [vmem:[%s1 + $0x10] sm:$0xff]
    %v32 = vld [vmem:[%s1 + $0x18] sm:$0xff]
    %v33 = vld [vmem:[%s2] sm:$0xff]
    %v34 = vld [vmem:[%s2 + $0x8] sm:$0xff]
    %v35 = vld [vmem:[%s2 + $0x10] sm:$0xff]
    %v36 = vld [vmem:[%s2 + $0x18] sm:$0xff]
    %38 = vset.pattern.permute.xlu0 0
    %39 = vperm.xlu0 %38, %v33
    %v40 = vpop.permute.xlu0 %39
    %43 = vset.pattern.permute.xlu0 0
    %44 = vperm.xlu0 %43, %v34
    %v45 = vpop.permute.xlu0 %44
    %48 = vset.pattern.permute.xlu0 0
    %49 = vperm.xlu0 %48, %v35
    %v50 = vpop.permute.xlu0 %49
    %53 = vset.pattern.permute.xlu0 0
    %54 = vperm.xlu0 %53, %v36
    %v55 = vpop.permute.xlu0 %54
    %vm57 = vcmask 130048
    %v59 = vsel %vm57, %v29, 0
    %v62 = vsel %vm57, %v30, 0
    %v65 = vsel %vm57, %v31, 0
    %v68 = vsel %vm57, %v32, 0
    %v71 = vsel %vm57, %v28, 0
    %73 = vmatpush.xpose.msra.mxu0 0.0
    %74 = vmatpush.xpose.msra.mxu0 0.0
    %75 = vmatpush.xpose.msra.mxu0 0.0
    %76 = vmatpush.xpose.msra.mxu0 0.0
    %77 = vmatpush.xpose.msra.mxu0 0.0
    %78 = vmatpush.xpose.msra.mxu0 0.0
    %79 = vmatpush.xpose.msra.mxu0 0.0
    %80 = vmatpush.xpose.msra.mxu0 0.0
    %81 = vmatpush.xpose.msra.mxu0 0.0
    %82 = vmatpush.xpose.msra.mxu0 0.0
    %83 = vmatpush.xpose.msra.mxu0 0.0
    %84 = vmatpush.xpose.msra.mxu0 0.0
    %85 = vmatpush.xpose.msra.mxu0 0.0
    %86 = vmatpush.xpose.msra.mxu0 0.0
    %87 = vmatpush.xpose.msra.mxu0 0.0
    %88 = vmatpush.xpose.msra.mxu0 %v71
    %89 = vmatmul.f32.gmra.mxu0 %v59
    %v90 = vpop.f32.mrf.mxu0
    %v91 = vadd.f32 %v40, %v90
    %92 = vmatmul.f32.gmra.mxu0 %v62
    %v93 = vpop.f32.mrf.mxu0
    %v94 = vadd.f32 %v45, %v93
    %95 = vmatmul.f32.gmra.mxu0 %v65
    %v96 = vpop.f32.mrf.mxu0
    %v97 = vadd.f32 %v50, %v96
    %98 = vmatmul.f32.gmra.mxu0 %v68
    %v99 = vpop.f32.mrf.mxu0
    %v100 = vadd.f32 %v55, %v99
    %101 = vdwg.mxu0
    %v102 = vtanh.pop %v91
    %v103 = vtanh.pop %v94
    %v104 = vtanh.pop %v97
    %v105 = vtanh.pop %v100
    %v106 = vld [vmem:[%s3] sm:$0xff]
    %v107 = vld [vmem:[%s3 + $0x8] sm:$0xff]
    %v108 = vld [vmem:[%s3 + $0x10] sm:$0xff]
    %v109 = vld [vmem:[%s3 + $0x18] sm:$0xff]
    %v110 = vld [vmem:[%s4] sm:$0xff]
    %v111 = vld [vmem:[%s4 + $0x8] sm:$0xff]
    %v112 = vld [vmem:[%s4 + $0x10] sm:$0xff]
    %v113 = vld [vmem:[%s4 + $0x18] sm:$0xff]
    %115 = vset.pattern.permute.xlu0 0
    %116 = vperm.xlu0 %115, %v110
    %v117 = vpop.permute.xlu0 %116
    %120 = vset.pattern.permute.xlu0 0
    %121 = vperm.xlu0 %120, %v111
    %v122 = vpop.permute.xlu0 %121
    %125 = vset.pattern.permute.xlu0 0
    %126 = vperm.xlu0 %125, %v112
    %v127 = vpop.permute.xlu0 %126
    %130 = vset.pattern.permute.xlu0 0
    %131 = vperm.xlu0 %130, %v113
    %v132 = vpop.permute.xlu0 %131
    %vm134 = vcmask 261120
    %v136 = vsel %vm134, %v106, 0
    %v139 = vsel %vm134, %v107, 0
    %v142 = vsel %vm134, %v108, 0
    %v145 = vsel %vm134, %v109, 0
    %147 = vmatpush.msra.mxu0 0.0
    %148 = vmatpush.msra.mxu0 0.0
    %149 = vmatpush.msra.mxu0 0.0
    %150 = vmatpush.msra.mxu0 0.0
    %151 = vmatpush.msra.mxu0 0.0
    %152 = vmatpush.msra.mxu0 0.0
    %153 = vmatpush.msra.mxu0 0.0
    %154 = vmatpush.msra.mxu0 0.0
    %155 = vmatpush.msra.mxu0 0.0
    %156 = vmatpush.msra.mxu0 0.0
    %157 = vmatpush.msra.mxu0 0.0
    %158 = vmatpush.msra.mxu0 0.0
    %159 = vmatpush.msra.mxu0 %v105
    %160 = vmatpush.msra.mxu0 %v104
    %161 = vmatpush.msra.mxu0 %v103
    %162 = vmatpush.msra.mxu0 %v102
    %163 = vmatmul.f32.gmra.mxu0 %v136
    %v164 = vpop.f32.mrf.mxu0
    %v165 = vadd.f32 %v117, %v164
    %166 = vmatmul.f32.gmra.mxu0 %v139
    %v167 = vpop.f32.mrf.mxu0
    %v168 = vadd.f32 %v122, %v167
    %169 = vmatmul.f32.gmra.mxu0 %v142
    %v170 = vpop.f32.mrf.mxu0
    %v171 = vadd.f32 %v127, %v170
    %172 = vmatmul.f32.gmra.mxu0 %v145
    %v173 = vpop.f32.mrf.mxu0
    %v174 = vadd.f32 %v132, %v173
    %175 = vdwg.mxu0
    %v176 = vtanh.pop %v165
    %v177 = vtanh.pop %v168
    %v178 = vtanh.pop %v171
    %v179 = vtanh.pop %v174
    %v180 = vld [vmem:[%s5] sm:$0xff]
    %v181 = vld [vmem:[%s5 + $0x8] sm:$0xff]
    %v182 = vld [vmem:[%s5 + $0x10] sm:$0xff]
    %v183 = vld [vmem:[%s5 + $0x18] sm:$0xff]
    %185 = vset.pattern.permute.xlu0 0
    %186 = vperm.xlu0 %185, %v180
    %v187 = vpop.permute.xlu0 %186
    %190 = vset.pattern.permute.xlu0 0
    %191 = vperm.xlu0 %190, %v181
    %v192 = vpop.permute.xlu0 %191
    %195 = vset.pattern.permute.xlu0 0
    %196 = vperm.xlu0 %195, %v182
    %v197 = vpop.permute.xlu0 %196
    %200 = vset.pattern.permute.xlu0 0
    %201 = vperm.xlu0 %200, %v183
    %v202 = vpop.permute.xlu0 %201
    %v204 = vmul.f32 %v176, %v187
    %v205 = vmul.f32 %v177, %v192
    %v206 = vmul.f32 %v178, %v197
    %v207 = vmul.f32 %v179, %v202
    %vm208 = vcmask 64512
    %v209 = vsel %vm208, %v204, 0.0
    %v210 = vsel %vm208, %v205, 0.0
    %v211 = vadd.f32 %v209, %v210
    %v212 = vsel %vm208, %v206, 0.0
    %v213 = vadd.f32 %v211, %v212
    %v214 = vsel %vm208, %v207, 0.0
    %v215 = vadd.f32 %v213, %v214
    %v216 = vrot.slane %v215, 4
    %v217 = vadd.f32 %v215, %v216
    %v218 = vrot.slane %v217, 2
    %v219 = vadd.f32 %v217, %v218
    %v220 = vrot.slane %v219, 1
    %v221 = vadd.f32 %v219, %v220
    %s222 = sld [smem:[#allocation2]]
    %v223 = vstv %s222
    %v224 = vadd.f32 %v221, %v223
    %vm225 = vcmask 57344
    %226 = vst.msk [vmem:[#allocation3] sm:$0x1] %vm225, %v224
    // Predicated region
    $region30: #{mlp_critic_forward.1} parent=1 // pred_check
      _
    $region31: #{mlp_critic_forward.1} parent=1 // pred_check_branch
      %228 = sbr.rel (0) target = $region33
    $region32: #{mlp_critic_forward.1} parent=1 // pred_region
      %230 = vsyncadd [#allocation4], 0
      %s232 = sshll.u32 [#allocation3], 4
      %s233 = int_to_ptr.vmem [resolvable:$true] %s232
      %s234 = sshll.u32 %s7, 4
      %s235 = int_to_ptr.hbm [resolvable:$true] %s234
      %237 = dma.vmem_to_hbm [thread:$0]  %s233, 16, %s235, [#allocation4]
    $region33: #{mlp_critic_forward.1} parent=1 // pred_fallthru
      _
    // Predicated region
    $region34: #{mlp_critic_forward.1} parent=1 // pred_check
      _
    $region35: #{mlp_critic_forward.1} parent=1 // pred_check_branch
      %239 = sbr.rel (0) target = $region37
    $region36: #{mlp_critic_forward.1} parent=1 // pred_region
      %241 = dma.done [#allocation4], 16
    $region37: #{mlp_critic_forward.1} parent=1 // pred_fallthru
      _
    %242 = vsyncpa [#allocation4], 1

</llo_original>
